<compile_context>
chip_gen: v7x
topology: tpu7x:2x2x1
jax: 0.10.0
libtpu: 0.0.40
codegen_flags: <defaults>
</compile_context>

<pallas_src>
import math

import numpy as np
import jax
import jax.numpy as jnp
from jax.experimental import pallas as pl
from jax.experimental.pallas import tpu as pltpu

MAX_INDEX = 1000
EMBED_DIM = 32                 # D
HIDDEN = 4 * EMBED_DIM         # 4D = 128
BATCH = 8                      # small demo batch of timestep indices


def _round_up(x: int, m: int) -> int:
    return ((x + m - 1) // m) * m


def _inv_freq_table(max_index: int, half: int) -> np.ndarray:
    """Host-precomputed constant frequency table (hoisted out of the kernel)."""
    return np.exp(
        -math.log(max_index) * np.arange(half, dtype=np.float64) / half
    ).astype(np.float32)


def timestep_embedding_kernel(ix_ref, inv_freq_ref, w1t_ref, b1_ref, w2t_ref,
                              b2_ref, out_ref):
    """Feature-major fused: sinusoidal embedding -> Linear(D,4D) -> SiLU -> Linear(4D,D).

    Shapes (TB = batch tile, on the 128-lane axis):
      ix_ref       (1, TB)    f32 timestep indices (lane-dense)
      inv_freq_ref (half, 1)  f32 constant
      w1t_ref      (H, D)     W1^T   (f32 or bf16)
      b1_ref       (H, 1)     f32
      w2t_ref      (D, H)     W2^T   (f32 or bf16)
      b2_ref       (D, 1)     f32
      out_ref      (D, TB)    f32    (lane-dense output block)
    """
    ix = ix_ref[...]                                   # (1, TB)
    arg = inv_freq_ref[...] * ix                       # (half,1)*(1,TB) -> (half, TB)
    # Half-width transcendentals; concat along the sublane (feature) axis.
    emb = jnp.concatenate([jnp.sin(arg), jnp.cos(arg)], axis=0)   # (D, TB)

    cdt = w1t_ref.dtype                                # f32 (default) or bf16
    h = jnp.dot(w1t_ref[...], emb.astype(cdt),
                preferred_element_type=jnp.float32)    # (H, TB) f32 accum
    h = h + b1_ref[...]                                # (H, TB) + (H, 1)
    h = h * jax.nn.sigmoid(h)                          # SiLU in f32 (VPU/EUP)
    out = jnp.dot(w2t_ref[...], h.astype(cdt),
                  preferred_element_type=jnp.float32)  # (D, TB)
    out_ref[...] = (out + b2_ref[...]).astype(out_ref.dtype)


def timestep_embedding(ix, w1, b1, w2, b2, *, max_index=MAX_INDEX,
                       tile_b=2048, compute_dtype=jnp.float32,
                       feature_major_out=False):
    """ix: (B,) integer timestep indices -> (B, D) float32 embeddings.

    If feature_major_out=True, returns the (D, B) slab the kernel produces
    (skip this kernel's only non-lane-dense step, the final transpose, when the
    consumer can take feature-major data).
    """
    B = ix.shape[0]
    D, H = w1.shape
    assert D % 2 == 0, "embedding_dim must be even"
    assert w2.shape == (H, D), f"w2 shape {w2.shape} != {(H, D)}"
    half = D // 2

    # Feature-major parameters (one-time, tiny transposes done by XLA).
    w1t = jnp.asarray(w1).T.astype(compute_dtype)            # (H, D)
    w2t = jnp.asarray(w2).T.astype(compute_dtype)            # (D, H)
    b1c = jnp.asarray(b1, jnp.float32).reshape(H, 1)
    b2c = jnp.asarray(b2, jnp.float32).reshape(D, 1)
    inv_freq = jnp.asarray(_inv_freq_table(max_index, half)).reshape(half, 1)

    # Lane-dense batch axis: tile must be a multiple of 128; clamp to the padded
    # batch so small batches run a single grid step without a huge tile.
    tile = max(128, min(int(tile_b), _round_up(B, 128)))
    tile = _round_up(tile, 128)
    n_tiles = pl.cdiv(B, tile)
    b_pad = n_tiles * tile

    ix_row = ix.astype(jnp.float32).reshape(1, B)
    if b_pad != B:
        # Pads only the tiny (1, B) index row (B*4 bytes), not a (B, 1) column.
        ix_row = jnp.pad(ix_row, ((0, 0), (0, b_pad - B)))

    out_fm = pl.pallas_call(
        timestep_embedding_kernel,
        out_shape=jax.ShapeDtypeStruct((D, b_pad), jnp.float32),
        grid=(n_tiles,),
        in_specs=[
            pl.BlockSpec((1, tile), lambda i: (0, i)),     # ix row tile (lane-dense)
            pl.BlockSpec((half, 1), lambda i: (0, 0)),     # inv_freq column (const)
            pl.BlockSpec((H, D), lambda i: (0, 0)),        # W1^T (grid-invariant)
            pl.BlockSpec((H, 1), lambda i: (0, 0)),        # b1 column
            pl.BlockSpec((D, H), lambda i: (0, 0)),        # W2^T
            pl.BlockSpec((D, 1), lambda i: (0, 0)),        # b2 column
        ],
        out_specs=pl.BlockSpec((D, tile), lambda i: (0, i)),  # lane-dense output
        compiler_params=pltpu.CompilerParams(
            # "parallel" lets v7x's two TensorCores split the batch grid; no-op on
            # v5e/v6e.  Switch to pltpu.CORE_PARALLEL if a v7x profile shows one
            # TC idle.  VMEM per tile is a few MiB even at tile_b=4096, so no
            # vmem_limit_bytes override is needed on any generation.
            dimension_semantics=("parallel",)),
    )(ix_row, inv_freq, w1t, b1c, w2t, b2c)

    out_fm = out_fm[:, :B]
    if feature_major_out:
        return out_fm                                   # (D, B)
    return out_fm.T                                     # (B, D) module contract


if __name__ == "__main__":
    key = jax.random.PRNGKey(0)
    k_ix, k_ix2, k_ix3, k_w1, k_b1, k_w2, k_b2 = jax.random.split(key, 7)

    # Deterministic synthetic parameters (PyTorch Linear-style uniform init).
    bound1 = 1.0 / math.sqrt(EMBED_DIM)
    bound2 = 1.0 / math.sqrt(HIDDEN)
    w1 = jax.random.uniform(k_w1, (EMBED_DIM, HIDDEN), jnp.float32, -bound1, bound1)
    b1 = jax.random.uniform(k_b1, (HIDDEN,), jnp.float32, -bound1, bound1)
    w2 = jax.random.uniform(k_w2, (HIDDEN, EMBED_DIM), jnp.float32, -bound2, bound2)
    b2 = jax.random.uniform(k_b2, (EMBED_DIM,), jnp.float32, -bound2, bound2)

    inv_freq_row = jnp.asarray(_inv_freq_table(MAX_INDEX, EMBED_DIM // 2))[None, :]

    def reference(ix):
        arg = ix.astype(jnp.float32)[:, None] * inv_freq_row
        emb = jnp.concatenate([jnp.sin(arg), jnp.cos(arg)], axis=-1)
        h = emb @ w1 + b1[None, :]
        h = h * jax.nn.sigmoid(h)
        return h @ w2 + b2[None, :]

    # --- small batch: single grid step, tile clamped to 128 ------------------
    ix_small = jax.random.randint(k_ix, (BATCH,), 0, MAX_INDEX, dtype=jnp.int32)
    out_small = jax.block_until_ready(timestep_embedding(ix_small, w1, b1, w2, b2))
    assert out_small.shape == (BATCH, EMBED_DIM)
    assert jnp.allclose(out_small, reference(ix_small), atol=1e-5, rtol=1e-5)

    # --- larger batch: default large tile (clamped to 256 here) --------------
    ix_big = jax.random.randint(k_ix2, (200,), 0, MAX_INDEX, dtype=jnp.int32)
    out_big = jax.block_until_ready(timestep_embedding(ix_big, w1, b1, w2, b2))
    assert out_big.shape == (200, EMBED_DIM)
    assert jnp.allclose(out_big, reference(ix_big), atol=1e-5, rtol=1e-5)

    # --- multi-tile grid path (forced small tile to exercise index maps) -----
    ix_multi = jax.random.randint(k_ix3, (300,), 0, MAX_INDEX, dtype=jnp.int32)
    out_multi = jax.block_until_ready(
        timestep_embedding(ix_multi, w1, b1, w2, b2, tile_b=128))
    assert out_multi.shape == (300, EMBED_DIM)
    assert jnp.allclose(out_multi, reference(ix_multi), atol=1e-5, rtol=1e-5)

    # --- bf16 matmul-operand path (native MXU dtype on v6e/v7x) --------------
    out_bf16 = jax.block_until_ready(
        timestep_embedding(ix_big, w1, b1, w2, b2, compute_dtype=jnp.bfloat16))
    assert out_bf16.shape == (200, EMBED_DIM)
    assert jnp.allclose(out_bf16, reference(ix_big), atol=5e-2, rtol=5e-2)

    print("KERNEL_OK")
</pallas_src>

<mosaic_0001>
module attributes {stable_mosaic.version = 11 : i64} {
  func.func @timestep_embedding_kernel(%arg0: i32, %arg1: memref<1x128xf32, #tpu.memory_space<vmem>>, %arg2: memref<16x1xf32, #tpu.memory_space<vmem>>, %arg3: memref<128x32xf32, #tpu.memory_space<vmem>>, %arg4: memref<128x1xf32, #tpu.memory_space<vmem>>, %arg5: memref<32x128xf32, #tpu.memory_space<vmem>>, %arg6: memref<32x1xf32, #tpu.memory_space<vmem>>, %arg7: memref<32x128xf32, #tpu.memory_space<vmem>>) attributes {dimension_semantics = [#tpu.dimension_semantics<parallel>], iteration_bounds = array<i64: 1>, scalar_prefetch = 0 : i64, scratch_operands = 0 : i64, tpu.core_type = #tpu.core_type<tc>, window_params = [{transform_indices = @transform_0, window_bounds = array<i64: 1, 128>}, {pipeline_mode = #tpu.pipeline_mode<synchronous>, transform_indices = @transform_1, window_bounds = array<i64: 16, 1>}, {pipeline_mode = #tpu.pipeline_mode<synchronous>, transform_indices = @transform_2, window_bounds = array<i64: 128, 32>}, {pipeline_mode = #tpu.pipeline_mode<synchronous>, transform_indices = @transform_3, window_bounds = array<i64: 128, 1>}, {pipeline_mode = #tpu.pipeline_mode<synchronous>, transform_indices = @transform_4, window_bounds = array<i64: 32, 128>}, {pipeline_mode = #tpu.pipeline_mode<synchronous>, transform_indices = @transform_5, window_bounds = array<i64: 32, 1>}, {transform_indices = @transform_6, window_bounds = array<i64: 32, 128>}]} {
    %c0 = arith.constant 0 : index
    %c0_0 = arith.constant 0 : index
    %0 = vector.load %arg1[%c0, %c0_0] : memref<1x128xf32, #tpu.memory_space<vmem>>, vector<1x128xf32>
    %c0_1 = arith.constant 0 : index
    %c0_2 = arith.constant 0 : index
    %1 = vector.load %arg2[%c0_1, %c0_2] : memref<16x1xf32, #tpu.memory_space<vmem>>, vector<16x1xf32>
    %2 = vector.broadcast %1 : vector<16x1xf32> to vector<16x128xf32>
    %3 = vector.broadcast %0 : vector<1x128xf32> to vector<16x128xf32>
    %4 = arith.mulf %2, %3 : vector<16x128xf32>
    %5 = math.sin %4 : vector<16x128xf32>
    %6 = math.cos %4 : vector<16x128xf32>
    %7 = tpu.concatenate %5, %6 in 0 : vector<16x128xf32>, vector<16x128xf32> -> vector<32x128xf32>
    %c0_3 = arith.constant 0 : index
    %c0_4 = arith.constant 0 : index
    %8 = vector.load %arg3[%c0_3, %c0_4] : memref<128x32xf32, #tpu.memory_space<vmem>>, vector<128x32xf32>
    %cst = arith.constant dense<0.000000e+00> : vector<128x128xf32>
    %9 = tpu.matmul %8, %7, %cst {dimension_numbers = #tpu.dot_dimension_numbers<[1], [0], [0], [1], [0, 0, 1, 1], [], []>} : vector<128x32xf32>, vector<32x128xf32>, vector<128x128xf32> -> vector<128x128xf32>
    %c0_5 = arith.constant 0 : index
    %c0_6 = arith.constant 0 : index
    %10 = vector.load %arg4[%c0_5, %c0_6] : memref<128x1xf32, #tpu.memory_space<vmem>>, vector<128x1xf32>
    %11 = vector.broadcast %10 : vector<128x1xf32> to vector<128x128xf32>
    %12 = arith.addf %9, %11 : vector<128x128xf32>
    %13 = arith.negf %12 : vector<128x128xf32>
    %14 = math.exp %13 : vector<128x128xf32>
    %cst_7 = arith.constant 1.000000e+00 : f32
    %15 = vector.broadcast %cst_7 : f32 to vector<128x128xf32>
    %16 = arith.addf %15, %14 : vector<128x128xf32>
    %17 = arith.divf %15, %16 : vector<128x128xf32>
    %18 = arith.mulf %12, %17 : vector<128x128xf32>
    %c0_8 = arith.constant 0 : index
    %c0_9 = arith.constant 0 : index
    %19 = vector.load %arg5[%c0_8, %c0_9] : memref<32x128xf32, #tpu.memory_space<vmem>>, vector<32x128xf32>
    %cst_10 = arith.constant dense<0.000000e+00> : vector<32x128xf32>
    %20 = tpu.matmul %19, %18, %cst_10 {dimension_numbers = #tpu.dot_dimension_numbers<[1], [0], [0], [1], [0, 0, 1, 1], [], []>} : vector<32x128xf32>, vector<128x128xf32>, vector<32x128xf32> -> vector<32x128xf32>
    %c0_11 = arith.constant 0 : index
    %c0_12 = arith.constant 0 : index
    %21 = vector.load %arg6[%c0_11, %c0_12] : memref<32x1xf32, #tpu.memory_space<vmem>>, vector<32x1xf32>
    %22 = vector.broadcast %21 : vector<32x1xf32> to vector<32x128xf32>
    %23 = arith.addf %20, %22 : vector<32x128xf32>
    %c0_13 = arith.constant 0 : index
    %c0_14 = arith.constant 0 : index
    %24 = vector.load %arg7[%c0_13, %c0_14] : memref<32x128xf32, #tpu.memory_space<vmem>>, vector<32x128xf32>
    tpu.vector_store %arg7[%c0_13, %c0_14], %23 {strides = array<i32>} : memref<32x128xf32, #tpu.memory_space<vmem>>, vector<32x128xf32>,
    return
  }
  func.func @transform_0(%arg0: i32) -> (i32, i32) {
    %c0_i32 = arith.constant 0 : i32
    %c0_i32_0 = arith.constant 0 : i32
    return %c0_i32, %arg0 : i32, i32
  }
  func.func @transform_1(%arg0: i32) -> (i32, i32) {
    %c0_i32 = arith.constant 0 : i32
    %c0_i32_0 = arith.constant 0 : i32
    %c0_i32_1 = arith.constant 0 : i32
    return %c0_i32, %c0_i32_0 : i32, i32
  }
  func.func @transform_2(%arg0: i32) -> (i32, i32) {
    %c0_i32 = arith.constant 0 : i32
    %c0_i32_0 = arith.constant 0 : i32
    %c0_i32_1 = arith.constant 0 : i32
    return %c0_i32, %c0_i32_0 : i32, i32
  }
  func.func @transform_3(%arg0: i32) -> (i32, i32) {
    %c0_i32 = arith.constant 0 : i32
    %c0_i32_0 = arith.constant 0 : i32
    %c0_i32_1 = arith.constant 0 : i32
    return %c0_i32, %c0_i32_0 : i32, i32
  }
  func.func @transform_4(%arg0: i32) -> (i32, i32) {
    %c0_i32 = arith.constant 0 : i32
    %c0_i32_0 = arith.constant 0 : i32
    %c0_i32_1 = arith.constant 0 : i32
    return %c0_i32, %c0_i32_0 : i32, i32
  }
  func.func @transform_5(%arg0: i32) -> (i32, i32) {
    %c0_i32 = arith.constant 0 : i32
    %c0_i32_0 = arith.constant 0 : i32
    %c0_i32_1 = arith.constant 0 : i32
    return %c0_i32, %c0_i32_0 : i32, i32
  }
  func.func @transform_6(%arg0: i32) -> (i32, i32) {
    %c0_i32 = arith.constant 0 : i32
    %c0_i32_0 = arith.constant 0 : i32
    return %c0_i32, %arg0 : i32, i32
  }
}

</mosaic_0001>

<llo_original>
// kernel: tpu_custom_call.1
$region0: #{tpu_custom_call.1}
  #allocation0 [shape = 'u32[]', space=smem, size = 0x4, offset = 0x4, fixed_abs, tag = 'smem constant byte address 0x4 - core index']
  #allocation1 [shape = 'u32[144,128]{1,0:T(1,128)}', space=vmem, size = 0x12000, scoped, tag = 'internal scratch']
  %s0 = inlined_call_operand.vmem [shape: f32[1,128], index: 0, kind: input, shape index: {}]
  %s1 = inlined_call_operand.vmem [shape: f32[16,1], index: 1, kind: input, shape index: {}]
  %s2 = inlined_call_operand.vmem [shape: f32[128,32], index: 2, kind: input, shape index: {}]
  %s3 = inlined_call_operand.vmem [shape: f32[128,1], index: 3, kind: input, shape index: {}]
  %s4 = inlined_call_operand.vmem [shape: f32[32,128], index: 4, kind: input, shape index: {}]
  %s5 = inlined_call_operand.vmem [shape: f32[32,1], index: 5, kind: input, shape index: {}]
  %s6 = inlined_call_operand.hbm [shape: f32[32,128], index: 6, kind: output, shape index: {}]
  %s7 = sld [smem:[#allocation0]]
  $region34: #{tpu_custom_call.1} parent=0
    _
  %s9 = ssub.s32 1, %s7
  %s10 = scalar_select 0, %s9, %s7
  $region1: #{tpu_custom_call.1} parent=0
    #allocation2 [shape = 'u8[16384]{0}', space=vmem, size = 0x4000, scoped, tag = 'output window, operand 0, single buffered']
    #allocation3 [shape = 's32[1]{0}', space=sflag, size = 0x4, scoped, tag = 'scoped memory for tpu_custom_call.1']
    %11 = vsyncpa [#allocation3], 0
    // Predicated region
    $region2: #{tpu_custom_call.1} parent=1 // pred_check
      _
    $region3: #{tpu_custom_call.1} parent=1 // pred_check_branch
      %13 = sbr.rel (0) target = $region5
    $region4: #{tpu_custom_call.1} parent=1 // pred_region
      _
    $region5: #{tpu_custom_call.1} parent=1 // pred_fallthru
      _
    // Predicated region
    $region6: #{tpu_custom_call.1} parent=1 // pred_check
      _
    $region7: #{tpu_custom_call.1} parent=1 // pred_check_branch
      %15 = sbr.rel (0) target = $region9
    $region8: #{tpu_custom_call.1} parent=1 // pred_region
      _
    $region9: #{tpu_custom_call.1} parent=1 // pred_fallthru
      _
    // Predicated region
    $region10: #{tpu_custom_call.1} parent=1 // pred_check
      _
    $region11: #{tpu_custom_call.1} parent=1 // pred_check_branch
      %17 = sbr.rel (0) target = $region13
    $region12: #{tpu_custom_call.1} parent=1 // pred_region
      _
    $region13: #{tpu_custom_call.1} parent=1 // pred_fallthru
      _
    // Predicated region
    $region14: #{tpu_custom_call.1} parent=1 // pred_check
      _
    $region15: #{tpu_custom_call.1} parent=1 // pred_check_branch
      %19 = sbr.rel (0) target = $region17
    $region16: #{tpu_custom_call.1} parent=1 // pred_region
      _
    $region17: #{tpu_custom_call.1} parent=1 // pred_fallthru
      _
    // Predicated region
    $region18: #{tpu_custom_call.1} parent=1 // pred_check
      _
    $region19: #{tpu_custom_call.1} parent=1 // pred_check_branch
      %21 = sbr.rel (0) target = $region21
    $region20: #{tpu_custom_call.1} parent=1 // pred_region
      _
    $region21: #{tpu_custom_call.1} parent=1 // pred_fallthru
      _
    // Predicated region
    $region22: #{tpu_custom_call.1} parent=1 // pred_check
      _
    $region23: #{tpu_custom_call.1} parent=1 // pred_check_branch
      %23 = sbr.rel (0) target = $region25
    $region24: #{tpu_custom_call.1} parent=1 // pred_region
      _
    $region25: #{tpu_custom_call.1} parent=1 // pred_fallthru
      _
    %v24 = vld [vmem:[%s0] sm:$0x1]
    %v25 = vld [vmem:[%s1] sm:$0xff]
    %v26 = vld [vmem:[%s1 + $0x8] sm:$0xff]
    %28 = vset.pattern.permute.xlu0 0
    %29 = vperm.xlu0 %28, %v25
    %v30 = vpop.permute.xlu0 %29
    %33 = vset.pattern.permute.xlu0 0
    %34 = vperm.xlu0 %33, %v26
    %v35 = vpop.permute.xlu0 %34
    %v38 = vlaneseq
    %v39 = vshrl.u32 %v38, 7
    %v40 = vsub.s32 0, %v39
    %v41 = vrot.slane %v24, %v40
    %v43 = vmul.f32 %v30, %v41
    %v44 = vmul.f32 %v35, %v41
    %v45 = vand.u32 2147483647, %v43
    %vm46 = vcmp.le.f32.partialorder %v45, 0.7853982
    %vm47 = vcmp.lt.s32.totalorder %v43, 0
    %v48 = vand.u32 %v43, 2139095040
    %v49 = vshrl.u32 %v48, 23
    %v50 = vsub.s32 %v49, 127
    %v51 = vand.u32 2147483647, %v43
    %v52 = vand.u32 %v51, 8388607
    %v53 = vor.u32 %v52, 8388608
    %v54 = vsub.s32 0, %v53
    %v55 = vadd.s32 %v50, 1
    %vm56 = vcmp.gt.s32.totalorder %v55, 0
    %v57 = vsel %vm56, %v55, 0
    %v58 = vshrl.u32 %v57, 5
    %v59 = vand.u32 %v57, 31
    %v60 = vsub.s32 32, %v59
    %v61 = vshrl.u32 683565275, %v60
    %v62 = vshll.u32 683565275, %v59
    %v63 = vshrl.u32 2475754826, %v60
    %v64 = vor.u32 %v62, %v63
    %v65 = vshll.u32 2475754826, %v59
    %v66 = vshrl.u32 2131351028, %v60
    %v67 = vor.u32 %v65, %v66
    %v68 = vshll.u32 2131351028, %v59
    %v69 = vshrl.u32 2102212464, %v60
    %v70 = vor.u32 %v68, %v69
    %v71 = vshll.u32 2102212464, %v59
    %v72 = vshrl.u32 920167782, %v60
    %v73 = vor.u32 %v71, %v72
    %v74 = vshll.u32 920167782, %v59
    %v75 = vshrl.u32 1326507024, %v60
    %v76 = vor.u32 %v74, %v75
    %vm77 = vcmp.lt.s32.totalorder %v58, 1
    %vm78 = vcmp.lt.s32.totalorder %v58, 2
    %vm79 = vcmp.lt.s32.totalorder %v58, 3
    %vm80 = vcmp.lt.s32.totalorder %v58, 4
    %v81 = vsel %vm77, %v61, %v64
    %v82 = vsel %vm80, %v70, 2102212464
    %v83 = vsel %vm79, %v67, %v82
    %v84 = vsel %vm78, %v81, %v83
    %v85 = vsel %vm77, %v64, %v67
    %v86 = vsel %vm80, %v73, 920167782
    %v87 = vsel %vm79, %v70, %v86
    %v88 = vsel %vm78, %v85, %v87
    %v89 = vsel %vm77, %v67, %v70
    %v90 = vsel %vm80, %v76, 1326507024
    %v91 = vsel %vm79, %v73, %v90
    %v92 = vsel %vm78, %v89, %v91
    %v93 = vshll.u32 %v53, 8
    %v94 = vmul.u32.u64.compose %v93, %v92
    %v95 = vextract.low.u32 %v94
    %v96 = vextract.high.u32 %v94
    %v97 = vmul.u32.u64.compose %v93, %v88
    %v98 = vextract.low.u32 %v97
    %v99 = vextract.high.u32 %v97
    %v100 = vmul.u32 %v93, %v84
    %v101 = vadd.s32 %v96, %v98
    %vm102 = vc.u32 %v96, %v98
    %v103 = vadd.s32 %v99, 1
    %v104 = vsel %vm102, %v103, %v99
    %v105 = vadd.s32 %v100, %v104
    %v106 = vadd.s32 %v105, 536870912
    %v107 = vshrl.u32 %v106, 30
    %v108 = vshll.u32 %v107, 30
    %v109 = vsub.s32 %v105, %v108
    %vm110 = vcmp.lt.s32.totalorder %v109, 0
    %v111 = vsub.s32 0, %v109
    %v112 = vsel %vm110, %v111, %v109
    %v113 = vclz %v112
    %v114 = vsub.s32 %v113, 2
    %vm115 = vcmp.gt.s32.totalorder 0, %v114
    %v116 = vsel %vm115, 0, %v114
    %v117 = vsub.s32 32, %v116
    %v118 = vshll.u32 %v109, %v116
    %v119 = vshrl.u32 %v101, %v117
    %v120 = vor.u32 %v118, %v119
    %v121 = vsub.s32 4294967266, %v116
    %v122 = vadd.s32 %v121, 127
    %v123 = vshll.u32 %v122, 23
    %v124 = vor.u32 4788187, %v123
    %v125 = vand.u32 2147483647, %v124
    %v127 = vcvt.s32.f32 %v120
    %v128 = vmul.f32 %v127, %v125
    %v129 = vxor.u32 %v128, 2147483648
    %v130 = vsel %vm47, %v129, %v128
    %v131 = vsub.s32 4, %v107
    %v132 = vsel %vm47, %v131, %v107
    %v133 = vsel %vm46, %v43, %v130
    %v134 = vsel %vm46, 0, %v132
    %v135 = vcosq.f32.pop %v133
    %v136 = vsinq.f32.pop %v133
    %vm137 = vweird.f32 %v43
    %v138 = vadd.s32 %v134, 3
    %v139 = vand.u32 %v138, 3
    %vm140 = vcmp.lt.s32.totalorder %v139, 2
    %vm141 = vcmp.eq.s32.totalorder %v139, 0
    %v142 = vxor.u32 %v136, 2147483648
    %v143 = vsel %vm141, %v135, %v142
    %vm144 = vcmp.eq.s32.totalorder %v139, 2
    %v145 = vxor.u32 %v135, 2147483648
    %v146 = vsel %vm144, %v145, %v136
    %v147 = vsel %vm140, %v143, %v146
    %v148 = vsel %vm137, nan, %v147
    %v149 = vand.u32 2147483647, %v44
    %vm150 = vcmp.le.f32.partialorder %v149, 0.7853982
    %vm151 = vcmp.lt.s32.totalorder %v44, 0
    %v152 = vand.u32 %v44, 2139095040
    %v153 = vshrl.u32 %v152, 23
    %v154 = vsub.s32 %v153, 127
    %v155 = vand.u32 2147483647, %v44
    %v156 = vand.u32 %v155, 8388607
    %v157 = vor.u32 %v156, 8388608
    %v158 = vsub.s32 0, %v157
    %v159 = vadd.s32 %v154, 1
    %vm160 = vcmp.gt.s32.totalorder %v159, 0
    %v161 = vsel %vm160, %v159, 0
    %v162 = vshrl.u32 %v161, 5
    %v163 = vand.u32 %v161, 31
    %v164 = vsub.s32 32, %v163
    %v165 = vshrl.u32 683565275, %v164
    %v166 = vshll.u32 683565275, %v163
    %v167 = vshrl.u32 2475754826, %v164
    %v168 = vor.u32 %v166, %v167
    %v169 = vshll.u32 2475754826, %v163
    %v170 = vshrl.u32 2131351028, %v164
    %v171 = vor.u32 %v169, %v170
    %v172 = vshll.u32 2131351028, %v163
    %v173 = vshrl.u32 2102212464, %v164
    %v174 = vor.u32 %v172, %v173
    %v175 = vshll.u32 2102212464, %v163
    %v176 = vshrl.u32 920167782, %v164
    %v177 = vor.u32 %v175, %v176
    %v178 = vshll.u32 920167782, %v163
    %v179 = vshrl.u32 1326507024, %v164
    %v180 = vor.u32 %v178, %v179
    %vm181 = vcmp.lt.s32.totalorder %v162, 1
    %vm182 = vcmp.lt.s32.totalorder %v162, 2
    %vm183 = vcmp.lt.s32.totalorder %v162, 3
    %vm184 = vcmp.lt.s32.totalorder %v162, 4
    %v185 = vsel %vm181, %v165, %v168
    %v186 = vsel %vm184, %v174, 2102212464
    %v187 = vsel %vm183, %v171, %v186
    %v188 = vsel %vm182, %v185, %v187
    %v189 = vsel %vm181, %v168, %v171
    %v190 = vsel %vm184, %v177, 920167782
    %v191 = vsel %vm183, %v174, %v190
    %v192 = vsel %vm182, %v189, %v191
    %v193 = vsel %vm181, %v171, %v174
    %v194 = vsel %vm184, %v180, 1326507024
    %v195 = vsel %vm183, %v177, %v194
    %v196 = vsel %vm182, %v193, %v195
    %v197 = vshll.u32 %v157, 8
    %v198 = vmul.u32.u64.compose %v197, %v196
    %v199 = vextract.low.u32 %v198
    %v200 = vextract.high.u32 %v198
    %v201 = vmul.u32.u64.compose %v197, %v192
    %v202 = vextract.low.u32 %v201
    %v203 = vextract.high.u32 %v201
    %v204 = vmul.u32 %v197, %v188
    %v205 = vadd.s32 %v200, %v202
    %vm206 = vc.u32 %v200, %v202
    %v207 = vadd.s32 %v203, 1
    %v208 = vsel %vm206, %v207, %v203
    %v209 = vadd.s32 %v204, %v208
    %v210 = vadd.s32 %v209, 536870912
    %v211 = vshrl.u32 %v210, 30
    %v212 = vshll.u32 %v211, 30
    %v213 = vsub.s32 %v209, %v212
    %vm214 = vcmp.lt.s32.totalorder %v213, 0
    %v215 = vsub.s32 0, %v213
    %v216 = vsel %vm214, %v215, %v213
    %v217 = vclz %v216
    %v218 = vsub.s32 %v217, 2
    %vm219 = vcmp.gt.s32.totalorder 0, %v218
    %v220 = vsel %vm219, 0, %v218
    %v221 = vsub.s32 32, %v220
    %v222 = vshll.u32 %v213, %v220
    %v223 = vshrl.u32 %v205, %v221
    %v224 = vor.u32 %v222, %v223
    %v225 = vsub.s32 4294967266, %v220
    %v226 = vadd.s32 %v225, 127
    %v227 = vshll.u32 %v226, 23
    %v228 = vor.u32 4788187, %v227
    %v229 = vand.u32 2147483647, %v228
    %v231 = vcvt.s32.f32 %v224
    %v232 = vmul.f32 %v231, %v229
    %v233 = vxor.u32 %v232, 2147483648
    %v234 = vsel %vm151, %v233, %v232
    %v235 = vsub.s32 4, %v211
    %v236 = vsel %vm151, %v235, %v211
    %v237 = vsel %vm150, %v44, %v234
    %v238 = vsel %vm150, 0, %v236
    %v239 = vcosq.f32.pop %v237
    %v240 = vsinq.f32.pop %v237
    %vm241 = vweird.f32 %v44
    %v242 = vadd.s32 %v238, 3
    %v243 = vand.u32 %v242, 3
    %vm244 = vcmp.lt.s32.totalorder %v243, 2
    %vm245 = vcmp.eq.s32.totalorder %v243, 0
    %v246 = vxor.u32 %v240, 2147483648
    %v247 = vsel %vm245, %v239, %v246
    %vm248 = vcmp.eq.s32.totalorder %v243, 2
    %v249 = vxor.u32 %v239, 2147483648
    %v250 = vsel %vm248, %v249, %v240
    %v251 = vsel %vm244, %v247, %v250
    %v252 = vsel %vm241, nan, %v251
    %v253 = vand.u32 2147483647, %v43
    %vm254 = vcmp.le.f32.partialorder %v253, 0.7853982
    %vm255 = vcmp.lt.s32.totalorder %v43, 0
    %v256 = vand.u32 %v43, 2139095040
    %v257 = vshrl.u32 %v256, 23
    %v258 = vsub.s32 %v257, 127
    %v259 = vand.u32 2147483647, %v43
    %v260 = vand.u32 %v259, 8388607
    %v261 = vor.u32 %v260, 8388608
    %v262 = vsub.s32 0, %v261
    %v263 = vadd.s32 %v258, 1
    %vm264 = vcmp.gt.s32.totalorder %v263, 0
    %v265 = vsel %vm264, %v263, 0
    %v266 = vshrl.u32 %v265, 5
    %v267 = vand.u32 %v265, 31
    %v268 = vsub.s32 32, %v267
    %v269 = vshrl.u32 683565275, %v268
    %v270 = vshll.u32 683565275, %v267
    %v271 = vshrl.u32 2475754826, %v268
    %v272 = vor.u32 %v270, %v271
    %v273 = vshll.u32 2475754826, %v267
    %v274 = vshrl.u32 2131351028, %v268
    %v275 = vor.u32 %v273, %v274
    %v276 = vshll.u32 2131351028, %v267
    %v277 = vshrl.u32 2102212464, %v268
    %v278 = vor.u32 %v276, %v277
    %v279 = vshll.u32 2102212464, %v267
    %v280 = vshrl.u32 920167782, %v268
    %v281 = vor.u32 %v279, %v280
    %v282 = vshll.u32 920167782, %v267
    %v283 = vshrl.u32 1326507024, %v268
    %v284 = vor.u32 %v282, %v283
    %vm285 = vcmp.lt.s32.totalorder %v266, 1
    %vm286 = vcmp.lt.s32.totalorder %v266, 2
    %vm287 = vcmp.lt.s32.totalorder %v266, 3
    %vm288 = vcmp.lt.s32.totalorder %v266, 4
    %v289 = vsel %vm285, %v269, %v272
    %v290 = vsel %vm288, %v278, 2102212464
    %v291 = vsel %vm287, %v275, %v290
    %v292 = vsel %vm286, %v289, %v291
    %v293 = vsel %vm285, %v272, %v275
    %v294 = vsel %vm288, %v281, 920167782
    %v295 = vsel %vm287, %v278, %v294
    %v296 = vsel %vm286, %v293, %v295
    %v297 = vsel %vm285, %v275, %v278
    %v298 = vsel %vm288, %v284, 1326507024
    %v299 = vsel %vm287, %v281, %v298
    %v300 = vsel %vm286, %v297, %v299
    %v301 = vshll.u32 %v261, 8
    %v302 = vmul.u32.u64.compose %v301, %v300
    %v303 = vextract.low.u32 %v302
    %v304 = vextract.high.u32 %v302
    %v305 = vmul.u32.u64.compose %v301, %v296
    %v306 = vextract.low.u32 %v305
    %v307 = vextract.high.u32 %v305
    %v308 = vmul.u32 %v301, %v292
    %v309 = vadd.s32 %v304, %v306
    %vm310 = vc.u32 %v304, %v306
    %v311 = vadd.s32 %v307, 1
    %v312 = vsel %vm310, %v311, %v307
    %v313 = vadd.s32 %v308, %v312
    %v314 = vadd.s32 %v313, 536870912
    %v315 = vshrl.u32 %v314, 30
    %v316 = vshll.u32 %v315, 30
    %v317 = vsub.s32 %v313, %v316
    %vm318 = vcmp.lt.s32.totalorder %v317, 0
    %v319 = vsub.s32 0, %v317
    %v320 = vsel %vm318, %v319, %v317
    %v321 = vclz %v320
    %v322 = vsub.s32 %v321, 2
    %vm323 = vcmp.gt.s32.totalorder 0, %v322
    %v324 = vsel %vm323, 0, %v322
    %v325 = vsub.s32 32, %v324
    %v326 = vshll.u32 %v317, %v324
    %v327 = vshrl.u32 %v309, %v325
    %v328 = vor.u32 %v326, %v327
    %v329 = vsub.s32 4294967266, %v324
    %v330 = vadd.s32 %v329, 127
    %v331 = vshll.u32 %v330, 23
    %v332 = vor.u32 4788187, %v331
    %v333 = vand.u32 2147483647, %v332
    %v335 = vcvt.s32.f32 %v328
    %v336 = vmul.f32 %v335, %v333
    %v337 = vxor.u32 %v336, 2147483648
    %v338 = vsel %vm255, %v337, %v336
    %v339 = vsub.s32 4, %v315
    %v340 = vsel %vm255, %v339, %v315
    %v341 = vsel %vm254, %v43, %v338
    %v342 = vsel %vm254, 0, %v340
    %v343 = vcosq.f32.pop %v341
    %v344 = vsinq.f32.pop %v341
    %vm345 = vweird.f32 %v43
    %v346 = vand.u32 %v342, 3
    %vm347 = vcmp.lt.s32.totalorder %v346, 2
    %vm348 = vcmp.eq.s32.totalorder %v346, 0
    %v349 = vxor.u32 %v344, 2147483648
    %v350 = vsel %vm348, %v343, %v349
    %vm351 = vcmp.eq.s32.totalorder %v346, 2
    %v352 = vxor.u32 %v343, 2147483648
    %v353 = vsel %vm351, %v352, %v344
    %v354 = vsel %vm347, %v350, %v353
    %v355 = vsel %vm345, nan, %v354
    %v356 = vand.u32 2147483647, %v44
    %vm357 = vcmp.le.f32.partialorder %v356, 0.7853982
    %vm358 = vcmp.lt.s32.totalorder %v44, 0
    %v359 = vand.u32 %v44, 2139095040
    %v360 = vshrl.u32 %v359, 23
    %v361 = vsub.s32 %v360, 127
    %v362 = vand.u32 2147483647, %v44
    %v363 = vand.u32 %v362, 8388607
    %v364 = vor.u32 %v363, 8388608
    %v365 = vsub.s32 0, %v364
    %v366 = vadd.s32 %v361, 1
    %vm367 = vcmp.gt.s32.totalorder %v366, 0
    %v368 = vsel %vm367, %v366, 0
    %v369 = vshrl.u32 %v368, 5
    %v370 = vand.u32 %v368, 31
    %v371 = vsub.s32 32, %v370
    %v372 = vshrl.u32 683565275, %v371
    %v373 = vshll.u32 683565275, %v370
    %v374 = vshrl.u32 2475754826, %v371
    %v375 = vor.u32 %v373, %v374
    %v376 = vshll.u32 2475754826, %v370
    %v377 = vshrl.u32 2131351028, %v371
    %v378 = vor.u32 %v376, %v377
    %v379 = vshll.u32 2131351028, %v370
    %v380 = vshrl.u32 2102212464, %v371
    %v381 = vor.u32 %v379, %v380
    %v382 = vshll.u32 2102212464, %v370
    %v383 = vshrl.u32 920167782, %v371
    %v384 = vor.u32 %v382, %v383
    %v385 = vshll.u32 920167782, %v370
    %v386 = vshrl.u32 1326507024, %v371
    %v387 = vor.u32 %v385, %v386
    %vm388 = vcmp.lt.s32.totalorder %v369, 1
    %vm389 = vcmp.lt.s32.totalorder %v369, 2
    %vm390 = vcmp.lt.s32.totalorder %v369, 3
    %vm391 = vcmp.lt.s32.totalorder %v369, 4
    %v392 = vsel %vm388, %v372, %v375
    %v393 = vsel %vm391, %v381, 2102212464
    %v394 = vsel %vm390, %v378, %v393
    %v395 = vsel %vm389, %v392, %v394
    %v396 = vsel %vm388, %v375, %v378
    %v397 = vsel %vm391, %v384, 920167782
    %v398 = vsel %vm390, %v381, %v397
    %v399 = vsel %vm389, %v396, %v398
    %v400 = vsel %vm388, %v378, %v381
    %v401 = vsel %vm391, %v387, 1326507024
    %v402 = vsel %vm390, %v384, %v401
    %v403 = vsel %vm389, %v400, %v402
    %v404 = vshll.u32 %v364, 8
    %v405 = vmul.u32.u64.compose %v404, %v403
    %v406 = vextract.low.u32 %v405
    %v407 = vextract.high.u32 %v405
    %v408 = vmul.u32.u64.compose %v404, %v399
    %v409 = vextract.low.u32 %v408
    %v410 = vextract.high.u32 %v408
    %v411 = vmul.u32 %v404, %v395
    %v412 = vadd.s32 %v407, %v409
    %vm413 = vc.u32 %v407, %v409
    %v414 = vadd.s32 %v410, 1
    %v415 = vsel %vm413, %v414, %v410
    %v416 = vadd.s32 %v411, %v415
    %v417 = vadd.s32 %v416, 536870912
    %v418 = vshrl.u32 %v417, 30
    %v419 = vshll.u32 %v418, 30
    %v420 = vsub.s32 %v416, %v419
    %vm421 = vcmp.lt.s32.totalorder %v420, 0
    %v422 = vsub.s32 0, %v420
    %v423 = vsel %vm421, %v422, %v420
    %v424 = vclz %v423
    %v425 = vsub.s32 %v424, 2
    %vm426 = vcmp.gt.s32.totalorder 0, %v425
    %v427 = vsel %vm426, 0, %v425
    %v428 = vsub.s32 32, %v427
    %v429 = vshll.u32 %v420, %v427
    %v430 = vshrl.u32 %v412, %v428
    %v431 = vor.u32 %v429, %v430
    %v432 = vsub.s32 4294967266, %v427
    %v433 = vadd.s32 %v432, 127
    %v434 = vshll.u32 %v433, 23
    %v435 = vor.u32 4788187, %v434
    %v436 = vand.u32 2147483647, %v435
    %v438 = vcvt.s32.f32 %v431
    %v439 = vmul.f32 %v438, %v436
    %v440 = vxor.u32 %v439, 2147483648
    %v441 = vsel %vm358, %v440, %v439
    %v442 = vsub.s32 4, %v418
    %v443 = vsel %vm358, %v442, %v418
    %v444 = vsel %vm357, %v44, %v441
    %v445 = vsel %vm357, 0, %v443
    %v446 = vcosq.f32.pop %v444
    %v447 = vsinq.f32.pop %v444
    %vm448 = vweird.f32 %v44
    %v449 = vand.u32 %v445, 3
    %vm450 = vcmp.lt.s32.totalorder %v449, 2
    %vm451 = vcmp.eq.s32.totalorder %v449, 0
    %v452 = vxor.u32 %v447, 2147483648
    %v453 = vsel %vm451, %v446, %v452
    %vm454 = vcmp.eq.s32.totalorder %v449, 2
    %v455 = vxor.u32 %v446, 2147483648
    %v456 = vsel %vm454, %v455, %v447
    %v457 = vsel %vm450, %v453, %v456
    %v458 = vsel %vm448, nan, %v457
    %v459 = vld [vmem:[%s2] sm:$0xff]
    %v460 = vld [vmem:[%s2 + $0x8] sm:$0xff]
    %v461 = vld [vmem:[%s2 + $0x10] sm:$0xff]
    %v462 = vld [vmem:[%s2 + $0x18] sm:$0xff]
    %v463 = vld [vmem:[%s2 + $0x20] sm:$0xff]
    %v464 = vld [vmem:[%s2 + $0x28] sm:$0xff]
    %v465 = vld [vmem:[%s2 + $0x30] sm:$0xff]
    %v466 = vld [vmem:[%s2 + $0x38] sm:$0xff]
    %v467 = vld [vmem:[%s2 + $0x40] sm:$0xff]
    %v468 = vld [vmem:[%s2 + $0x48] sm:$0xff]
    %v469 = vld [vmem:[%s2 + $0x50] sm:$0xff]
    %v470 = vld [vmem:[%s2 + $0x58] sm:$0xff]
    %v471 = vld [vmem:[%s2 + $0x60] sm:$0xff]
    %v472 = vld [vmem:[%s2 + $0x68] sm:$0xff]
    %v473 = vld [vmem:[%s2 + $0x70] sm:$0xff]
    %v474 = vld [vmem:[%s2 + $0x78] sm:$0xff]
    %v475 = vld [vmem:[%s3] sm:$0xff]
    %v476 = vld [vmem:[%s3 + $0x8] sm:$0xff]
    %v477 = vld [vmem:[%s3 + $0x10] sm:$0xff]
    %v478 = vld [vmem:[%s3 + $0x18] sm:$0xff]
    %v479 = vld [vmem:[%s3 + $0x20] sm:$0xff]
    %v480 = vld [vmem:[%s3 + $0x28] sm:$0xff]
    %v481 = vld [vmem:[%s3 + $0x30] sm:$0xff]
    %v482 = vld [vmem:[%s3 + $0x38] sm:$0xff]
    %v483 = vld [vmem:[%s3 + $0x40] sm:$0xff]
    %v484 = vld [vmem:[%s3 + $0x48] sm:$0xff]
    %v485 = vld [vmem:[%s3 + $0x50] sm:$0xff]
    %v486 = vld [vmem:[%s3 + $0x58] sm:$0xff]
    %v487 = vld [vmem:[%s3 + $0x60] sm:$0xff]
    %v488 = vld [vmem:[%s3 + $0x68] sm:$0xff]
    %v489 = vld [vmem:[%s3 + $0x70] sm:$0xff]
    %v490 = vld [vmem:[%s3 + $0x78] sm:$0xff]
    %492 = vset.pattern.permute.xlu0 0
    %493 = vperm.xlu0 %492, %v475
    %v494 = vpop.permute.xlu0 %493
    %497 = vset.pattern.permute.xlu0 0
    %498 = vperm.xlu0 %497, %v476
    %v499 = vpop.permute.xlu0 %498
    %502 = vset.pattern.permute.xlu0 0
    %503 = vperm.xlu0 %502, %v477
    %v504 = vpop.permute.xlu0 %503
    %507 = vset.pattern.permute.xlu0 0
    %508 = vperm.xlu0 %507, %v478
    %v509 = vpop.permute.xlu0 %508
    %512 = vset.pattern.permute.xlu0 0
    %513 = vperm.xlu0 %512, %v479
    %v514 = vpop.permute.xlu0 %513
    %517 = vset.pattern.permute.xlu0 0
    %518 = vperm.xlu0 %517, %v480
    %v519 = vpop.permute.xlu0 %518
    %522 = vset.pattern.permute.xlu0 0
    %523 = vperm.xlu0 %522, %v481
    %v524 = vpop.permute.xlu0 %523
    %527 = vset.pattern.permute.xlu0 0
    %528 = vperm.xlu0 %527, %v482
    %v529 = vpop.permute.xlu0 %528
    %532 = vset.pattern.permute.xlu0 0
    %533 = vperm.xlu0 %532, %v483
    %v534 = vpop.permute.xlu0 %533
    %537 = vset.pattern.permute.xlu0 0
    %538 = vperm.xlu0 %537, %v484
    %v539 = vpop.permute.xlu0 %538
    %542 = vset.pattern.permute.xlu0 0
    %543 = vperm.xlu0 %542, %v485
    %v544 = vpop.permute.xlu0 %543
    %547 = vset.pattern.permute.xlu0 0
    %548 = vperm.xlu0 %547, %v486
    %v549 = vpop.permute.xlu0 %548
    %552 = vset.pattern.permute.xlu0 0
    %553 = vperm.xlu0 %552, %v487
    %v554 = vpop.permute.xlu0 %553
    %557 = vset.pattern.permute.xlu0 0
    %558 = vperm.xlu0 %557, %v488
    %v559 = vpop.permute.xlu0 %558
    %562 = vset.pattern.permute.xlu0 0
    %563 = vperm.xlu0 %562, %v489
    %v564 = vpop.permute.xlu0 %563
    %567 = vset.pattern.permute.xlu0 0
    %568 = vperm.xlu0 %567, %v490
    %v569 = vpop.permute.xlu0 %568
    %vm571 = vcmask 261120
    %v573 = vsel %vm571, %v459, 0
    %v576 = vsel %vm571, %v460, 0
    %v579 = vsel %vm571, %v461, 0
    %v582 = vsel %vm571, %v462, 0
    %v585 = vsel %vm571, %v463, 0
    %v588 = vsel %vm571, %v464, 0
    %v591 = vsel %vm571, %v465, 0
    %v594 = vsel %vm571, %v466, 0
    %v597 = vsel %vm571, %v467, 0
    %v600 = vsel %vm571, %v468, 0
    %v603 = vsel %vm571, %v469, 0
    %v606 = vsel %vm571, %v470, 0
    %v609 = vsel %vm571, %v471, 0
    %v612 = vsel %vm571, %v472, 0
    %v615 = vsel %vm571, %v473, 0
    %v618 = vsel %vm571, %v474, 0
    %620 = vmatprep.subr.mxu0 0.0
    %621 = vmatpush1.msra.mxu0 %v148
    %622 = vmatprep.subr.mxu0 0.0
    %623 = vmatpush1.msra.mxu0 %v252
    %624 = vmatprep.subr.mxu0 0.0
    %625 = vmatpush1.msra.mxu0 %v355
    %626 = vmatprep.subr.mxu0 0.0
    %627 = vmatpush1.msra.mxu0 %v458
    %628 = vmatprep.subr.mxu0 0.0
    %629 = vmatpush1.msra.mxu0 0.0
    %630 = vmatprep.subr.mxu0 0.0
    %631 = vmatpush1.msra.mxu0 0.0
    %632 = vmatprep.subr.mxu0 0.0
    %633 = vmatpush1.msra.mxu0 0.0
    %634 = vmatprep.subr.mxu0 0.0
    %635 = vmatpush1.msra.mxu0 0.0
    %636 = vmatprep.subr.mxu0 0.0
    %637 = vmatpush1.msra.mxu0 0.0
    %638 = vmatprep.subr.mxu0 0.0
    %639 = vmatpush1.msra.mxu0 0.0
    %640 = vmatprep.subr.mxu0 0.0
    %641 = vmatpush1.msra.mxu0 0.0
    %642 = vmatprep.subr.mxu0 0.0
    %643 = vmatpush1.msra.mxu0 0.0
    %644 = vmatprep.subr.mxu0 0.0
    %645 = vmatpush1.msra.mxu0 0.0
    %646 = vmatprep.subr.mxu0 0.0
    %647 = vmatpush1.msra.mxu0 0.0
    %648 = vmatprep.subr.mxu0 0.0
    %649 = vmatpush1.msra.mxu0 0.0
    %650 = vmatprep.subr.mxu0 0.0
    %651 = vmatpush1.msra.mxu0 0.0
    %652 = vmatprep.subr.mxu0 0.0
    %653 = vmatpush1.msra.mxu0 0.0
    %654 = vmatprep.subr.mxu0 0.0
    %655 = vmatpush1.msra.mxu0 0.0
    %656 = vmatprep.subr.mxu0 0.0
    %657 = vmatpush1.msra.mxu0 0.0
    %658 = vmatprep.subr.mxu0 0.0
    %659 = vmatpush1.msra.mxu0 0.0
    %660 = vmatprep.subr.mxu0 0.0
    %661 = vmatpush1.msra.mxu0 0.0
    %662 = vmatprep.subr.mxu0 0.0
    %663 = vmatpush1.msra.mxu0 0.0
    %664 = vmatprep.subr.mxu0 0.0
    %665 = vmatpush1.msra.mxu0 0.0
    %666 = vmatprep.subr.mxu0 0.0
    %667 = vmatpush1.msra.mxu0 0.0
    %668 = vmatprep.subr.mxu0 0.0
    %669 = vmatpush1.msra.mxu0 0.0
    %670 = vmatprep.subr.mxu0 0.0
    %671 = vmatpush1.msra.mxu0 0.0
    %672 = vmatprep.subr.mxu0 0.0
    %673 = vmatpush1.msra.mxu0 0.0
    %674 = vmatprep.subr.mxu0 0.0
    %675 = vmatpush1.msra.mxu0 0.0
    %676 = vmatprep.subr.mxu0 0.0
    %677 = vmatpush1.msra.mxu0 0.0
    %678 = vmatprep.subr.mxu0 0.0
    %679 = vmatpush1.msra.mxu0 0.0
    %680 = vmatprep.subr.mxu0 0.0
    %681 = vmatpush1.msra.mxu0 0.0
    %682 = vmatprep.subr.mxu0 0.0
    %683 = vmatpush1.msra.mxu0 0.0
    %684 = vmatprep.mubr.f32.mxu0 0.0
    %685 = vmatmul.mubr.f32.gmra.mrb[0].mxu0 %v573
    %v686 = vpop.f32.mrb[0].mxu0
    %v687 = vadd.f32 %v494, %v686
    %v688 = vpop.f32.mrb[0].mxu0
    %689 = vmatprep.mubr.f32.mxu0 0.0
    %690 = vmatmul.mubr.f32.gmra.mrb[0].mxu0 %v576
    %v691 = vpop.f32.mrb[0].mxu0
    %v692 = vadd.f32 %v499, %v691
    %v693 = vpop.f32.mrb[0].mxu0
    %694 = vmatprep.mubr.f32.mxu0 0.0
    %695 = vmatmul.mubr.f32.gmra.mrb[0].mxu0 %v579
    %v696 = vpop.f32.mrb[0].mxu0
    %v697 = vadd.f32 %v504, %v696
    %v698 = vpop.f32.mrb[0].mxu0
    %699 = vmatprep.mubr.f32.mxu0 0.0
    %700 = vmatmul.mubr.f32.gmra.mrb[0].mxu0 %v582
    %v701 = vpop.f32.mrb[0].mxu0
    %v702 = vadd.f32 %v509, %v701
    %v703 = vpop.f32.mrb[0].mxu0
    %704 = vmatprep.mubr.f32.mxu0 0.0
    %705 = vmatmul.mubr.f32.gmra.mrb[0].mxu0 %v585
    %v706 = vpop.f32.mrb[0].mxu0
    %v707 = vadd.f32 %v514, %v706
    %v708 = vpop.f32.mrb[0].mxu0
    %709 = vmatprep.mubr.f32.mxu0 0.0
    %710 = vmatmul.mubr.f32.gmra.mrb[0].mxu0 %v588
    %v711 = vpop.f32.mrb[0].mxu0
    %v712 = vadd.f32 %v519, %v711
    %v713 = vpop.f32.mrb[0].mxu0
    %714 = vmatprep.mubr.f32.mxu0 0.0
    %715 = vmatmul.mubr.f32.gmra.mrb[0].mxu0 %v591
    %v716 = vpop.f32.mrb[0].mxu0
    %v717 = vadd.f32 %v524, %v716
    %v718 = vpop.f32.mrb[0].mxu0
    %719 = vmatprep.mubr.f32.mxu0 0.0
    %720 = vmatmul.mubr.f32.gmra.mrb[0].mxu0 %v594
    %v721 = vpop.f32.mrb[0].mxu0
    %v722 = vadd.f32 %v529, %v721
    %v723 = vpop.f32.mrb[0].mxu0
    %724 = vmatprep.mubr.f32.mxu0 0.0
    %725 = vmatmul.mubr.f32.gmra.mrb[0].mxu0 %v597
    %v726 = vpop.f32.mrb[0].mxu0
    %v727 = vadd.f32 %v534, %v726
    %v728 = vpop.f32.mrb[0].mxu0
    %729 = vmatprep.mubr.f32.mxu0 0.0
    %730 = vmatmul.mubr.f32.gmra.mrb[0].mxu0 %v600
    %v731 = vpop.f32.mrb[0].mxu0
    %v732 = vadd.f32 %v539, %v731
    %v733 = vpop.f32.mrb[0].mxu0
    %734 = vmatprep.mubr.f32.mxu0 0.0
    %735 = vmatmul.mubr.f32.gmra.mrb[0].mxu0 %v603
    %v736 = vpop.f32.mrb[0].mxu0
    %v737 = vadd.f32 %v544, %v736
    %v738 = vpop.f32.mrb[0].mxu0
    %739 = vmatprep.mubr.f32.mxu0 0.0
    %740 = vmatmul.mubr.f32.gmra.mrb[0].mxu0 %v606
    %v741 = vpop.f32.mrb[0].mxu0
    %v742 = vadd.f32 %v549, %v741
    %v743 = vpop.f32.mrb[0].mxu0
    %744 = vmatprep.mubr.f32.mxu0 0.0
    %745 = vmatmul.mubr.f32.gmra.mrb[0].mxu0 %v609
    %v746 = vpop.f32.mrb[0].mxu0
    %v747 = vadd.f32 %v554, %v746
    %v748 = vpop.f32.mrb[0].mxu0
    %749 = vmatprep.mubr.f32.mxu0 0.0
    %750 = vmatmul.mubr.f32.gmra.mrb[0].mxu0 %v612
    %v751 = vpop.f32.mrb[0].mxu0
    %v752 = vadd.f32 %v559, %v751
    %v753 = vpop.f32.mrb[0].mxu0
    %754 = vmatprep.mubr.f32.mxu0 0.0
    %755 = vmatmul.mubr.f32.gmra.mrb[0].mxu0 %v615
    %v756 = vpop.f32.mrb[0].mxu0
    %v757 = vadd.f32 %v564, %v756
    %v758 = vpop.f32.mrb[0].mxu0
    %759 = vmatprep.mubr.f32.mxu0 0.0
    %760 = vmatmul.mubr.f32.gmra.mrb[0].mxu0 %v618
    %v761 = vpop.f32.mrb[0].mxu0
    %v762 = vadd.f32 %v569, %v761
    %v763 = vpop.f32.mrb[0].mxu0
    %764 = vdwg.mxu0
    %v765 = vxor.u32 %v687, 2147483648
    %v766 = vxor.u32 %v692, 2147483648
    %v767 = vxor.u32 %v697, 2147483648
    %v768 = vxor.u32 %v702, 2147483648
    %v769 = vxor.u32 %v707, 2147483648
    %v770 = vxor.u32 %v712, 2147483648
    %v771 = vxor.u32 %v717, 2147483648
    %v772 = vxor.u32 %v722, 2147483648
    %v773 = vxor.u32 %v727, 2147483648
    %v774 = vxor.u32 %v732, 2147483648
    %v775 = vxor.u32 %v737, 2147483648
    %v776 = vxor.u32 %v742, 2147483648
    %v777 = vxor.u32 %v747, 2147483648
    %v778 = vxor.u32 %v752, 2147483648
    %v779 = vxor.u32 %v757, 2147483648
    %v780 = vxor.u32 %v762, 2147483648
    %v781 = vmul.f32 %v765, 1.442695
    %v782 = vpow.pop %v781
    %v783 = vmul.f32 %v766, 1.442695
    %v784 = vpow.pop %v783
    %v785 = vmul.f32 %v767, 1.442695
    %v786 = vpow.pop %v785
    %v787 = vmul.f32 %v768, 1.442695
    %v788 = vpow.pop %v787
    %v789 = vmul.f32 %v769, 1.442695
    %v790 = vpow.pop %v789
    %v791 = vmul.f32 %v770, 1.442695
    %v792 = vpow.pop %v791
    %v793 = vmul.f32 %v771, 1.442695
    %v794 = vpow.pop %v793
    %v795 = vmul.f32 %v772, 1.442695
    %v796 = vpow.pop %v795
    %v797 = vmul.f32 %v773, 1.442695
    %v798 = vpow.pop %v797
    %v799 = vmul.f32 %v774, 1.442695
    %v800 = vpow.pop %v799
    %v801 = vmul.f32 %v775, 1.442695
    %v802 = vpow.pop %v801
    %v803 = vmul.f32 %v776, 1.442695
    %v804 = vpow.pop %v803
    %v805 = vmul.f32 %v777, 1.442695
    %v806 = vpow.pop %v805
    %v807 = vmul.f32 %v778, 1.442695
    %v808 = vpow.pop %v807
    %v809 = vmul.f32 %v779, 1.442695
    %v810 = vpow.pop %v809
    %v811 = vmul.f32 %v780, 1.442695
    %v812 = vpow.pop %v811
    %v813 = vadd.f32 %v782, 1.0
    %v814 = vadd.f32 %v784, 1.0
    %v815 = vadd.f32 %v786, 1.0
    %v816 = vadd.f32 %v788, 1.0
    %v817 = vadd.f32 %v790, 1.0
    %v818 = vadd.f32 %v792, 1.0
    %v819 = vadd.f32 %v794, 1.0
    %v820 = vadd.f32 %v796, 1.0
    %v821 = vadd.f32 %v798, 1.0
    %v822 = vadd.f32 %v800, 1.0
    %v823 = vadd.f32 %v802, 1.0
    %v824 = vadd.f32 %v804, 1.0
    %v825 = vadd.f32 %v806, 1.0
    %v826 = vadd.f32 %v808, 1.0
    %v827 = vadd.f32 %v810, 1.0
    %v828 = vadd.f32 %v812, 1.0
    %v829 = vrcp.pop %v813
    %v830 = vmul.f32 1.0, %v829
    %v831 = vrcp.pop %v814
    %v832 = vmul.f32 1.0, %v831
    %v833 = vrcp.pop %v815
    %v834 = vmul.f32 1.0, %v833
    %v835 = vrcp.pop %v816
    %v836 = vmul.f32 1.0, %v835
    %v837 = vrcp.pop %v817
    %v838 = vmul.f32 1.0, %v837
    %v839 = vrcp.pop %v818
    %v840 = vmul.f32 1.0, %v839
    %v841 = vrcp.pop %v819
    %v842 = vmul.f32 1.0, %v841
    %v843 = vrcp.pop %v820
    %v844 = vmul.f32 1.0, %v843
    %v845 = vrcp.pop %v821
    %v846 = vmul.f32 1.0, %v845
    %v847 = vrcp.pop %v822
    %v848 = vmul.f32 1.0, %v847
    %v849 = vrcp.pop %v823
    %v850 = vmul.f32 1.0, %v849
    %v851 = vrcp.pop %v824
    %v852 = vmul.f32 1.0, %v851
    %v853 = vrcp.pop %v825
    %v854 = vmul.f32 1.0, %v853
    %v855 = vrcp.pop %v826
    %v856 = vmul.f32 1.0, %v855
    %v857 = vrcp.pop %v827
    %v858 = vmul.f32 1.0, %v857
    %v859 = vrcp.pop %v828
    %v860 = vmul.f32 1.0, %v859
    %v861 = vmul.f32 %v687, %v830
    %v862 = vmul.f32 %v692, %v832
    %v863 = vmul.f32 %v697, %v834
    %v864 = vmul.f32 %v702, %v836
    %v865 = vmul.f32 %v707, %v838
    %v866 = vmul.f32 %v712, %v840
    %v867 = vmul.f32 %v717, %v842
    %v868 = vmul.f32 %v722, %v844
    %v869 = vmul.f32 %v727, %v846
    %v870 = vmul.f32 %v732, %v848
    %v871 = vmul.f32 %v737, %v850
    %v872 = vmul.f32 %v742, %v852
    %v873 = vmul.f32 %v747, %v854
    %v874 = vmul.f32 %v752, %v856
    %v875 = vmul.f32 %v757, %v858
    %v876 = vmul.f32 %v762, %v860
    %v877 = vld [vmem:[%s4] sm:$0xff]
    %v878 = vld [vmem:[%s4 + $0x8] sm:$0xff]
    %v879 = vld [vmem:[%s4 + $0x10] sm:$0xff]
    %v880 = vld [vmem:[%s4 + $0x18] sm:$0xff]
    %v881 = vld [vmem:[%s5] sm:$0xff]
    %v882 = vld [vmem:[%s5 + $0x8] sm:$0xff]
    %v883 = vld [vmem:[%s5 + $0x10] sm:$0xff]
    %v884 = vld [vmem:[%s5 + $0x18] sm:$0xff]
    %886 = vset.pattern.permute.xlu0 0
    %887 = vperm.xlu0 %886, %v881
    %v888 = vpop.permute.xlu0 %887
    %891 = vset.pattern.permute.xlu0 0
    %892 = vperm.xlu0 %891, %v882
    %v893 = vpop.permute.xlu0 %892
    %896 = vset.pattern.permute.xlu0 0
    %897 = vperm.xlu0 %896, %v883
    %v898 = vpop.permute.xlu0 %897
    %901 = vset.pattern.permute.xlu0 0
    %902 = vperm.xlu0 %901, %v884
    %v903 = vpop.permute.xlu0 %902
    %905 = vmatprep.subr.mxu0 0.0
    %906 = vmatpush1.msra.mxu0 %v861
    %907 = vmatprep.subr.mxu0 0.0
    %908 = vmatpush1.msra.mxu0 %v862
    %909 = vmatprep.subr.mxu0 0.0
    %910 = vmatpush1.msra.mxu0 %v863
    %911 = vmatprep.subr.mxu0 0.0
    %912 = vmatpush1.msra.mxu0 %v864
    %913 = vmatprep.subr.mxu0 0.0
    %914 = vmatpush1.msra.mxu0 %v865
    %915 = vmatprep.subr.mxu0 0.0
    %916 = vmatpush1.msra.mxu0 %v866
    %917 = vmatprep.subr.mxu0 0.0
    %918 = vmatpush1.msra.mxu0 %v867
    %919 = vmatprep.subr.mxu0 0.0
    %920 = vmatpush1.msra.mxu0 %v868
    %921 = vmatprep.subr.mxu0 0.0
    %922 = vmatpush1.msra.mxu0 %v869
    %923 = vmatprep.subr.mxu0 0.0
    %924 = vmatpush1.msra.mxu0 %v870
    %925 = vmatprep.subr.mxu0 0.0
    %926 = vmatpush1.msra.mxu0 %v871
    %927 = vmatprep.subr.mxu0 0.0
    %928 = vmatpush1.msra.mxu0 %v872
    %929 = vmatprep.subr.mxu0 0.0
    %930 = vmatpush1.msra.mxu0 %v873
    %931 = vmatprep.subr.mxu0 0.0
    %932 = vmatpush1.msra.mxu0 %v874
    %933 = vmatprep.subr.mxu0 0.0
    %934 = vmatpush1.msra.mxu0 %v875
    %935 = vmatprep.subr.mxu0 0.0
    %936 = vmatpush1.msra.mxu0 %v876
    %937 = vmatprep.subr.mxu0 0.0
    %938 = vmatpush1.msra.mxu0 0.0
    %939 = vmatprep.subr.mxu0 0.0
    %940 = vmatpush1.msra.mxu0 0.0
    %941 = vmatprep.subr.mxu0 0.0
    %942 = vmatpush1.msra.mxu0 0.0
    %943 = vmatprep.subr.mxu0 0.0
    %944 = vmatpush1.msra.mxu0 0.0
    %945 = vmatprep.subr.mxu0 0.0
    %946 = vmatpush1.msra.mxu0 0.0
    %947 = vmatprep.subr.mxu0 0.0
    %948 = vmatpush1.msra.mxu0 0.0
    %949 = vmatprep.subr.mxu0 0.0
    %950 = vmatpush1.msra.mxu0 0.0
    %951 = vmatprep.subr.mxu0 0.0
    %952 = vmatpush1.msra.mxu0 0.0
    %953 = vmatprep.subr.mxu0 0.0
    %954 = vmatpush1.msra.mxu0 0.0
    %955 = vmatprep.subr.mxu0 0.0
    %956 = vmatpush1.msra.mxu0 0.0
    %957 = vmatprep.subr.mxu0 0.0
    %958 = vmatpush1.msra.mxu0 0.0
    %959 = vmatprep.subr.mxu0 0.0
    %960 = vmatpush1.msra.mxu0 0.0
    %961 = vmatprep.subr.mxu0 0.0
    %962 = vmatpush1.msra.mxu0 0.0
    %963 = vmatprep.subr.mxu0 0.0
    %964 = vmatpush1.msra.mxu0 0.0
    %965 = vmatprep.subr.mxu0 0.0
    %966 = vmatpush1.msra.mxu0 0.0
    %967 = vmatprep.subr.mxu0 0.0
    %968 = vmatpush1.msra.mxu0 0.0
    %969 = vmatprep.mubr.f32.mxu0 0.0
    %970 = vmatmul.mubr.f32.gmra.mrb[0].mxu0 %v877
    %v971 = vpop.f32.mrb[0].mxu0
    %v972 = vadd.f32 %v888, %v971
    %v973 = vpop.f32.mrb[0].mxu0
    %974 = vmatprep.mubr.f32.mxu0 0.0
    %975 = vmatmul.mubr.f32.gmra.mrb[0].mxu0 %v878
    %v976 = vpop.f32.mrb[0].mxu0
    %v977 = vadd.f32 %v893, %v976
    %v978 = vpop.f32.mrb[0].mxu0
    %979 = vmatprep.mubr.f32.mxu0 0.0
    %980 = vmatmul.mubr.f32.gmra.mrb[0].mxu0 %v879
    %v981 = vpop.f32.mrb[0].mxu0
    %v982 = vadd.f32 %v898, %v981
    %v983 = vpop.f32.mrb[0].mxu0
    %984 = vmatprep.mubr.f32.mxu0 0.0
    %985 = vmatmul.mubr.f32.gmra.mrb[0].mxu0 %v880
    %v986 = vpop.f32.mrb[0].mxu0
    %v987 = vadd.f32 %v903, %v986
    %v988 = vpop.f32.mrb[0].mxu0
    %989 = vdwg.mxu0
    %990 = vst [vmem:[#allocation2] sm:$0xff] %v972
    %991 = vst [vmem:[#allocation2 + $0x8] sm:$0xff] %v977
    %992 = vst [vmem:[#allocation2 + $0x10] sm:$0xff] %v982
    %993 = vst [vmem:[#allocation2 + $0x18] sm:$0xff] %v987
    // Predicated region
    $region26: #{tpu_custom_call.1} parent=1 // pred_check
      _
    $region27: #{tpu_custom_call.1} parent=1 // pred_check_branch
      %995 = sbr.rel (0) target = $region29
    $region28: #{tpu_custom_call.1} parent=1 // pred_region
      %s997 = ssub.s32 512, 512
      %998 = vsyncadd [#allocation3], %s997
      %s999 = sshll.u32 [#allocation2], 4
      %s1000 = int_to_ptr.vmem [resolvable:$true] %s999
      %1005 = dma.vmem_to_hbm [thread:$0]  %s1000, 512, %s6, [#allocation3], 128, 128, 8
    $region29: #{tpu_custom_call.1} parent=1 // pred_fallthru
      _
    // Predicated region
    $region30: #{tpu_custom_call.1} parent=1 // pred_check
      _
    $region31: #{tpu_custom_call.1} parent=1 // pred_check_branch
      %1007 = sbr.rel (0) target = $region33
    $region32: #{tpu_custom_call.1} parent=1 // pred_region
      %1008 = dma.done [#allocation3], 512
    $region33: #{tpu_custom_call.1} parent=1 // pred_fallthru
      _
    %1009 = vsyncpa [#allocation3], 1

</llo_original>
